<compile_context>
chip_gen: v7x
topology: tpu7x:2x2x1
jax: 0.10.0
libtpu: 0.0.40
codegen_flags: <defaults>
</compile_context>

<pallas_src>
import functools

import jax
import jax.numpy as jnp
from jax.experimental import pallas as pl
from jax.experimental.pallas import tpu as pltpu

# ----------------------------- configuration --------------------------------
CHANNELS = 3                       # module asserts channels == 3
NUM_MIXTURES = 4
NUM_BINS = 256
KH = KW = 3
# PixelCNN type-A 3x3 mask keeps only these (ky, kx) taps (row above + left).
_TAPS = ((0, 0), (0, 1), (0, 2), (1, 0))
KDIM = CHANNELS * len(_TAPS)       # 12 pruned im2col features
KDIM_AUG = KDIM + 1                # + ones row for the bias
PARAMS_PER_PIX = NUM_MIXTURES * (1 + 2 * CHANNELS + CHANNELS * (CHANNELS - 1) // 2)  # 40


# ------------------------------ Pallas kernel --------------------------------
def _mol_subset_kernel(patch_ref, w_ref, xlu_ref, z_ref, *, num_mixtures, num_bins):
    M = num_mixtures
    K = float(num_bins)
    half = 1.0 / (K - 1.0)

    # Masked conv + bias as a single MXU matmul: (40, 13) @ (13, T) -> (40, T)
    params = jnp.dot(w_ref[...], patch_ref[...], preferred_element_type=jnp.float32)

    xlu = xlu_ref[...]                      # (6, T)
    xl = xlu[0:CHANNELS]                    # (3, T)
    xu = xlu[CHANNELS:2 * CHANNELS]         # (3, T)

    # ---- mixture weights: direct softmax (no log_softmax->exp round trip) ----
    logit_w = params[0:M]                                   # (M, T)
    m = jnp.max(logit_w, axis=0, keepdims=True)             # (1, T)
    e = jnp.exp(logit_w - m)
    inv_denom = 1.0 / jnp.sum(e, axis=0, keepdims=True)
    w_mix = e * inv_denom                                   # (M, T)

    means = params[M:4 * M]                                 # (3M, T)
    log_scales = jnp.maximum(params[4 * M:7 * M], -7.0)     # (3M, T)
    coeffs = jnp.tanh(params[7 * M:10 * M])                 # (3M, T) channel correlations

    xl_m = 2.0 * xl - 1.0                                   # mean_lambd(x_lower), (3, T)

    # channel-wise autoregressive mean adjustment (R -> G -> B)
    mu = [
        means[0:M],
        means[M:2 * M] + coeffs[0:M] * xl_m[0:1],
        means[2 * M:3 * M]
        + coeffs[M:2 * M] * xl_m[0:1]
        + coeffs[2 * M:3 * M] * xl_m[1:2],
    ]

    def cmol_cdf(x, mu_c, inv_s, hh):
        # x: (1, T), mu_c/inv_s/hh: (M, T)
        xk = x * K
        k = jnp.clip(jnp.floor(xk), 0.0, K - 1.0)           # bin index
        frac = jnp.clip(xk - k, 0.0, 1.0)                   # position inside bin
        center = 2.0 * k / (K - 1.0) - 1.0                  # bin center in [-1, 1]
        a = (center - mu_c) * inv_s
        cdf_plus = jax.nn.sigmoid(a + hh)
        cdf_minus = jax.nn.sigmoid(a - hh)
        cdf_plus = jnp.where(k >= K - 1.0, 1.0, cdf_plus)   # last bin absorbs tail
        cdf_minus = jnp.where(k <= 0.0, 0.0, cdf_minus)     # first bin absorbs tail
        return cdf_minus + frac * (cdf_plus - cdf_minus)

    zl_rows, zu_rows = [], []
    for c in range(CHANNELS):
        ls = log_scales[c * M:(c + 1) * M]
        inv_s = jnp.exp(-ls)                                # hoisted: shared by both bounds
        hh = half * inv_s
        comp_l = cmol_cdf(xl[c:c + 1], mu[c], inv_s, hh)
        comp_u = cmol_cdf(xu[c:c + 1], mu[c], inv_s, hh)
        zl_rows.append(jnp.clip(jnp.sum(w_mix * comp_l, axis=0, keepdims=True), 0.0, 1.0))
        zu_rows.append(jnp.clip(jnp.sum(w_mix * comp_u, axis=0, keepdims=True), 0.0, 1.0))

    z_ref[...] = jnp.concatenate(zl_rows + zu_rows, axis=0)  # (6, T), lane-dense store


# --------------------------------- glue --------------------------------------
def _conv_mask_a():
    """PixelCNN type-A spatial mask for a 3x3 kernel (center excluded)."""
    mask = jnp.ones((KH, KW), jnp.float32)
    mask = mask.at[KH // 2, KW // 2:].set(0.0)
    mask = mask.at[KH // 2 + 1:, :].set(0.0)
    return mask


def _prepare_weights(w_raw, bias):
    """w_raw:(P, C, 3, 3), bias:(P,) -> (P, C*4+1) pruned-tap matmul weight."""
    w_taps = jnp.stack([w_raw[:, :, ky, kx] for ky, kx in _TAPS], axis=2)   # (P, C, 4)
    w_mat = w_taps.reshape(PARAMS_PER_PIX, KDIM)                            # (P, 12)
    w_aug = jnp.concatenate([w_mat, bias.reshape(-1, 1)], axis=1)           # (P, 13)
    return w_aug.astype(jnp.float32)


def _im2col_taps_T(x):
    """x:(B, C, H, W) -> (C*4, B*H*W): zero-padded live type-A taps, pixels on lanes."""
    B, C, H, W = x.shape
    xp = jnp.pad(x, ((0, 0), (0, 0), (1, 1), (1, 1)))
    cols = [xp[:, :, ky:ky + H, kx:kx + W] for ky, kx in _TAPS]   # 4 x (B, C, H, W)
    p = jnp.stack(cols, axis=2)                                   # (B, C, 4, H, W)
    return p.transpose(1, 2, 0, 3, 4).reshape(C * len(_TAPS), B * H * W)


def _pick_tile(n_pixels, target=2048, min_tile=128):
    """Lane-dense tile: multiple of 128, aim for >= ~8 grid steps when N allows."""
    cap = ((n_pixels + 7) // 8 // min_tile) * min_tile
    return max(min_tile, min(target, cap))


def mol_subset_forward(x_lower, x_upper, w_raw, bias, *, tile_n=None):
    """Pallas-backed forward of MultivariateMOLAutoregressiveSubsetTransform2d.

    x_lower, x_upper: (B, 3, H, W) float32 (NCHW, values in [0, 1]).
    Returns (z_lower, z_upper) with the same NCHW shape.
    """
    B, C, H, W = x_lower.shape
    assert C == CHANNELS
    N = B * H * W
    if tile_n is None:
        tile_n = _pick_tile(N)
    n_tiles = pl.cdiv(N, tile_n)
    n_pad = n_tiles * tile_n

    w_aug = _prepare_weights(w_raw, bias)                         # (40, 13)
    patches = _im2col_taps_T(x_lower)                             # net input = x_lower
    patches_aug = jnp.concatenate(
        [patches, jnp.ones((1, N), jnp.float32)], axis=0)         # (13, N), ones row = bias
    xlu = jnp.concatenate(
        [x_lower.transpose(1, 0, 2, 3).reshape(C, N),
         x_upper.transpose(1, 0, 2, 3).reshape(C, N)], axis=0)    # (6, N)

    if n_pad != N:
        pad = n_pad - N
        patches_aug = jnp.pad(patches_aug, ((0, 0), (0, pad)))
        xlu = jnp.pad(xlu, ((0, 0), (0, pad)))

    kernel = functools.partial(_mol_subset_kernel,
                               num_mixtures=NUM_MIXTURES, num_bins=NUM_BINS)

    cost = pl.CostEstimate(
        flops=int(2 * n_pad * KDIM_AUG * PARAMS_PER_PIX + 300 * n_pad),
        transcendentals=int(80 * n_pad),
        bytes_accessed=int(4 * n_pad * (KDIM_AUG + 2 * 2 * C)),
    )

    z = pl.pallas_call(
        kernel,
        out_shape=jax.ShapeDtypeStruct((2 * C, n_pad), jnp.float32),
        grid=(n_tiles,),
        in_specs=[
            pl.BlockSpec((KDIM_AUG, tile_n), lambda i: (0, i)),
            pl.BlockSpec((PARAMS_PER_PIX, KDIM_AUG), lambda i: (0, 0)),
            pl.BlockSpec((2 * C, tile_n), lambda i: (0, i)),
        ],
        out_specs=pl.BlockSpec((2 * C, tile_n), lambda i: (0, i)),
        compiler_params=pltpu.CompilerParams(dimension_semantics=("parallel",)),
        cost_estimate=cost,
    )(patches_aug, w_aug, xlu)

    z = z[:, :N]
    z_lower = z[0:C].reshape(C, B, H, W).transpose(1, 0, 2, 3)
    z_upper = z[C:2 * C].reshape(C, B, H, W).transpose(1, 0, 2, 3)
    return z_lower, z_upper


# ------------------------------ pure-JAX ref ----------------------------------
def _cmol_cdf_ref(x, mu, log_s, num_bins):
    K = float(num_bins)
    xk = x * K
    k = jnp.clip(jnp.floor(xk), 0.0, K - 1.0)
    frac = jnp.clip(xk - k, 0.0, 1.0)
    inv_s = jnp.exp(-log_s)
    center = 2.0 * k / (K - 1.0) - 1.0
    half = 1.0 / (K - 1.0)
    cdf_plus = jax.nn.sigmoid((center + half - mu) * inv_s)
    cdf_minus = jax.nn.sigmoid((center - half - mu) * inv_s)
    cdf_plus = jnp.where(k >= K - 1.0, 1.0, cdf_plus)
    cdf_minus = jnp.where(k <= 0.0, 0.0, cdf_minus)
    return cdf_minus + frac * (cdf_plus - cdf_minus)


def _mixture_outputs_ref(params, xl, xu, num_mixtures, num_bins):
    """params:(T, 10*M), xl/xu:(T, 3) -> (z_lower cols, z_upper cols). Original formulation."""
    M = num_mixtures
    logit_w = params[:, :M]
    m = jnp.max(logit_w, axis=-1, keepdims=True)
    log_w = logit_w - m - jnp.log(jnp.sum(jnp.exp(logit_w - m), axis=-1, keepdims=True))
    w_mix = jnp.exp(log_w)

    means = params[:, M:4 * M]
    log_scales = jnp.maximum(params[:, 4 * M:7 * M], -7.0)
    coeffs = jnp.tanh(params[:, 7 * M:10 * M])

    xl_m = 2.0 * xl - 1.0
    mu = [
        means[:, 0:M],
        means[:, M:2 * M] + coeffs[:, 0:M] * xl_m[:, 0:1],
        means[:, 2 * M:3 * M]
        + coeffs[:, M:2 * M] * xl_m[:, 0:1]
        + coeffs[:, 2 * M:3 * M] * xl_m[:, 1:2],
    ]

    zl_cols, zu_cols = [], []
    for c in range(CHANNELS):
        ls = log_scales[:, c * M:(c + 1) * M]
        comp_l = _cmol_cdf_ref(xl[:, c:c + 1], mu[c], ls, num_bins)
        comp_u = _cmol_cdf_ref(xu[:, c:c + 1], mu[c], ls, num_bins)
        zl_cols.append(jnp.clip(jnp.sum(w_mix * comp_l, axis=-1, keepdims=True), 0.0, 1.0))
        zu_cols.append(jnp.clip(jnp.sum(w_mix * comp_u, axis=-1, keepdims=True), 0.0, 1.0))
    return zl_cols, zu_cols


def reference_forward(x_lower, x_upper, w_raw, bias):
    B, C, H, W = x_lower.shape
    N = B * H * W
    w_masked = w_raw * _conv_mask_a()[None, None]
    params_map = jax.lax.conv_general_dilated(
        x_lower, w_masked, window_strides=(1, 1), padding="SAME",
        dimension_numbers=("NCHW", "OIHW", "NCHW"))
    params_map = params_map + bias[None, :, None, None]
    params = params_map.transpose(0, 2, 3, 1).reshape(N, PARAMS_PER_PIX)
    xl = x_lower.transpose(0, 2, 3, 1).reshape(N, C)
    xu = x_upper.transpose(0, 2, 3, 1).reshape(N, C)
    zl_cols, zu_cols = _mixture_outputs_ref(params, xl, xu, NUM_MIXTURES, NUM_BINS)
    zl = jnp.concatenate(zl_cols, axis=-1).reshape(B, H, W, C).transpose(0, 3, 1, 2)
    zu = jnp.concatenate(zu_cols, axis=-1).reshape(B, H, W, C).transpose(0, 3, 1, 2)
    return zl, zu


# ---------------------------------- main --------------------------------------
if __name__ == "__main__":
    key = jax.random.PRNGKey(0)
    k_x, k_w, k_b = jax.random.split(key, 3)

    B, H, W = 2, 16, 16
    # subset (hyper-cube) inputs: lower/upper corners of the quantization bin
    x = jax.random.uniform(k_x, (B, CHANNELS, H, W), dtype=jnp.float32,
                           minval=0.0, maxval=1.0)
    x_lower = jnp.floor(x * NUM_BINS) / NUM_BINS
    x_upper = x_lower + 1.0 / NUM_BINS

    # deterministic synthetic autoregressive-net parameters
    w_raw = 0.1 * jax.random.normal(k_w, (PARAMS_PER_PIX, CHANNELS, KH, KW),
                                    dtype=jnp.float32)
    bias = 0.01 * jax.random.normal(k_b, (PARAMS_PER_PIX,), dtype=jnp.float32)

    z_lower, z_upper = mol_subset_forward(x_lower, x_upper, w_raw, bias)
    jax.block_until_ready((z_lower, z_upper))

    zl_ref, zu_ref = reference_forward(x_lower, x_upper, w_raw, bias)
    assert z_lower.shape == (B, CHANNELS, H, W) and z_upper.shape == (B, CHANNELS, H, W)
    assert jnp.allclose(z_lower, zl_ref, atol=1e-4, rtol=1e-4)
    assert jnp.allclose(z_upper, zu_ref, atol=1e-4, rtol=1e-4)
    assert bool(jnp.all((z_lower >= 0.0) & (z_upper <= 1.0)
                        & (z_upper >= z_lower - 1e-6)))

    print("KERNEL_OK")
</pallas_src>

<mosaic_0001>
module attributes {stable_mosaic.version = 11 : i64} {
  func.func @_mol_subset_kernel(%arg0: i32, %arg1: memref<13x128xf32, #tpu.memory_space<vmem>>, %arg2: memref<40x13xf32, #tpu.memory_space<vmem>>, %arg3: memref<6x128xf32, #tpu.memory_space<vmem>>, %arg4: memref<6x128xf32, #tpu.memory_space<vmem>>) attributes {dimension_semantics = [#tpu.dimension_semantics<parallel>], iteration_bounds = array<i64: 4>, scalar_prefetch = 0 : i64, scratch_operands = 0 : i64, tpu.core_type = #tpu.core_type<tc>, window_params = [{transform_indices = @transform_0, window_bounds = array<i64: 13, 128>}, {pipeline_mode = #tpu.pipeline_mode<synchronous>, transform_indices = @transform_1, window_bounds = array<i64: 40, 13>}, {transform_indices = @transform_2, window_bounds = array<i64: 6, 128>}, {transform_indices = @transform_3, window_bounds = array<i64: 6, 128>}]} {
    %c0 = arith.constant 0 : index
    %c0_0 = arith.constant 0 : index
    %0 = vector.load %arg2[%c0, %c0_0] : memref<40x13xf32, #tpu.memory_space<vmem>>, vector<40x13xf32>
    %c0_1 = arith.constant 0 : index
    %c0_2 = arith.constant 0 : index
    %1 = vector.load %arg1[%c0_1, %c0_2] : memref<13x128xf32, #tpu.memory_space<vmem>>, vector<13x128xf32>
    %cst = arith.constant dense<0.000000e+00> : vector<40x128xf32>
    %2 = tpu.matmul %0, %1, %cst {dimension_numbers = #tpu.dot_dimension_numbers<[1], [0], [0], [1], [0, 0, 1, 1], [], []>} : vector<40x13xf32>, vector<13x128xf32>, vector<40x128xf32> -> vector<40x128xf32>
    %c0_3 = arith.constant 0 : index
    %c0_4 = arith.constant 0 : index
    %3 = vector.load %arg3[%c0_3, %c0_4] : memref<6x128xf32, #tpu.memory_space<vmem>>, vector<6x128xf32>
    %4 = vector.extract_strided_slice %3 {offsets = [0, 0], sizes = [3, 128], strides = [1, 1]} : vector<6x128xf32> to vector<3x128xf32>
    %5 = vector.extract_strided_slice %3 {offsets = [3, 0], sizes = [3, 128], strides = [1, 1]} : vector<6x128xf32> to vector<3x128xf32>
    %6 = vector.extract_strided_slice %2 {offsets = [0, 0], sizes = [4, 128], strides = [1, 1]} : vector<40x128xf32> to vector<4x128xf32>
    %cst_5 = arith.constant dense<0xFF800000> : vector<128xf32>
    %7 = vector.multi_reduction <maximumf>, %6, %cst_5 [0] : vector<4x128xf32> to vector<128xf32>
    %8 = vector.shape_cast %7 : vector<128xf32> to vector<1x128xf32>
    %9 = vector.broadcast %8 : vector<1x128xf32> to vector<4x128xf32>
    %10 = arith.subf %6, %9 : vector<4x128xf32>
    %11 = math.exp %10 : vector<4x128xf32>
    %cst_6 = arith.constant dense<0.000000e+00> : vector<128xf32>
    %12 = vector.multi_reduction <add>, %11, %cst_6 [0] : vector<4x128xf32> to vector<128xf32>
    %13 = vector.shape_cast %12 : vector<128xf32> to vector<1x128xf32>
    %cst_7 = arith.constant 1.000000e+00 : f32
    %14 = vector.broadcast %cst_7 : f32 to vector<1x128xf32>
    %15 = arith.divf %14, %13 : vector<1x128xf32>
    %16 = vector.broadcast %15 : vector<1x128xf32> to vector<4x128xf32>
    %17 = arith.mulf %11, %16 : vector<4x128xf32>
    %18 = vector.extract_strided_slice %2 {offsets = [4, 0], sizes = [12, 128], strides = [1, 1]} : vector<40x128xf32> to vector<12x128xf32>
    %19 = vector.extract_strided_slice %2 {offsets = [16, 0], sizes = [12, 128], strides = [1, 1]} : vector<40x128xf32> to vector<12x128xf32>
    %cst_8 = arith.constant -7.000000e+00 : f32
    %20 = vector.broadcast %cst_8 : f32 to vector<12x128xf32>
    %21 = arith.maximumf %19, %20 : vector<12x128xf32>
    %22 = vector.extract_strided_slice %2 {offsets = [28, 0], sizes = [12, 128], strides = [1, 1]} : vector<40x128xf32> to vector<12x128xf32>
    %23 = math.tanh %22 : vector<12x128xf32>
    %cst_9 = arith.constant 2.000000e+00 : f32
    %24 = vector.broadcast %cst_9 : f32 to vector<3x128xf32>
    %25 = arith.mulf %24, %4 : vector<3x128xf32>
    %cst_10 = arith.constant 1.000000e+00 : f32
    %26 = vector.broadcast %cst_10 : f32 to vector<3x128xf32>
    %27 = arith.subf %25, %26 : vector<3x128xf32>
    %28 = vector.extract_strided_slice %18 {offsets = [0, 0], sizes = [4, 128], strides = [1, 1]} : vector<12x128xf32> to vector<4x128xf32>
    %29 = vector.extract_strided_slice %18 {offsets = [4, 0], sizes = [4, 128], strides = [1, 1]} : vector<12x128xf32> to vector<4x128xf32>
    %30 = vector.extract_strided_slice %23 {offsets = [0, 0], sizes = [4, 128], strides = [1, 1]} : vector<12x128xf32> to vector<4x128xf32>
    %31 = vector.extract_strided_slice %27 {offsets = [0, 0], sizes = [1, 128], strides = [1, 1]} : vector<3x128xf32> to vector<1x128xf32>
    %32 = vector.broadcast %31 : vector<1x128xf32> to vector<4x128xf32>
    %33 = arith.mulf %30, %32 : vector<4x128xf32>
    %34 = arith.addf %29, %33 : vector<4x128xf32>
    %35 = vector.extract_strided_slice %18 {offsets = [8, 0], sizes = [4, 128], strides = [1, 1]} : vector<12x128xf32> to vector<4x128xf32>
    %36 = vector.extract_strided_slice %23 {offsets = [4, 0], sizes = [4, 128], strides = [1, 1]} : vector<12x128xf32> to vector<4x128xf32>
    %37 = vector.extract_strided_slice %27 {offsets = [0, 0], sizes = [1, 128], strides = [1, 1]} : vector<3x128xf32> to vector<1x128xf32>
    %38 = vector.broadcast %37 : vector<1x128xf32> to vector<4x128xf32>
    %39 = arith.mulf %36, %38 : vector<4x128xf32>
    %40 = arith.addf %35, %39 : vector<4x128xf32>
    %41 = vector.extract_strided_slice %23 {offsets = [8, 0], sizes = [4, 128], strides = [1, 1]} : vector<12x128xf32> to vector<4x128xf32>
    %42 = vector.extract_strided_slice %27 {offsets = [1, 0], sizes = [1, 128], strides = [1, 1]} : vector<3x128xf32> to vector<1x128xf32>
    %43 = vector.broadcast %42 : vector<1x128xf32> to vector<4x128xf32>
    %44 = arith.mulf %41, %43 : vector<4x128xf32>
    %45 = arith.addf %40, %44 : vector<4x128xf32>
    %46 = vector.extract_strided_slice %21 {offsets = [0, 0], sizes = [4, 128], strides = [1, 1]} : vector<12x128xf32> to vector<4x128xf32>
    %cst_11 = arith.constant 0.000000e+00 : f32
    %47 = vector.broadcast %cst_11 : f32 to vector<4x128xf32>
    %48 = arith.subf %47, %46 : vector<4x128xf32>
    %49 = math.exp %48 : vector<4x128xf32>
    %cst_12 = arith.constant 0.00392156886 : f32
    %50 = vector.broadcast %cst_12 : f32 to vector<4x128xf32>
    %51 = arith.mulf %50, %49 : vector<4x128xf32>
    %52 = vector.extract_strided_slice %4 {offsets = [0, 0], sizes = [1, 128], strides = [1, 1]} : vector<3x128xf32> to vector<1x128xf32>
    %cst_13 = arith.constant 2.560000e+02 : f32
    %53 = vector.broadcast %cst_13 : f32 to vector<1x128xf32>
    %54 = arith.mulf %52, %53 : vector<1x128xf32>
    %55 = math.floor %54 : vector<1x128xf32>
    %cst_14 = arith.constant 0.000000e+00 : f32
    %cst_15 = arith.constant 2.550000e+02 : f32
    %56 = vector.broadcast %cst_14 : f32 to vector<1x128xf32>
    %57 = arith.maximumf %56, %55 : vector<1x128xf32>
    %58 = vector.broadcast %cst_15 : f32 to vector<1x128xf32>
    %59 = arith.minimumf %58, %57 : vector<1x128xf32>
    %60 = arith.subf %54, %59 : vector<1x128xf32>
    %cst_16 = arith.constant 0.000000e+00 : f32
    %cst_17 = arith.constant 1.000000e+00 : f32
    %61 = vector.broadcast %cst_16 : f32 to vector<1x128xf32>
    %62 = arith.maximumf %61, %60 : vector<1x128xf32>
    %63 = vector.broadcast %cst_17 : f32 to vector<1x128xf32>
    %64 = arith.minimumf %63, %62 : vector<1x128xf32>
    %cst_18 = arith.constant 2.000000e+00 : f32
    %65 = vector.broadcast %cst_18 : f32 to vector<1x128xf32>
    %66 = arith.mulf %65, %59 : vector<1x128xf32>
    %cst_19 = arith.constant 2.550000e+02 : f32
    %67 = vector.broadcast %cst_19 : f32 to vector<1x128xf32>
    %68 = arith.divf %66, %67 : vector<1x128xf32>
    %cst_20 = arith.constant 1.000000e+00 : f32
    %69 = vector.broadcast %cst_20 : f32 to vector<1x128xf32>
    %70 = arith.subf %68, %69 : vector<1x128xf32>
    %71 = vector.broadcast %70 : vector<1x128xf32> to vector<4x128xf32>
    %72 = arith.subf %71, %28 : vector<4x128xf32>
    %73 = arith.mulf %72, %49 : vector<4x128xf32>
    %74 = arith.addf %73, %51 : vector<4x128xf32>
    %75 = arith.negf %74 : vector<4x128xf32>
    %76 = math.exp %75 : vector<4x128xf32>
    %cst_21 = arith.constant 1.000000e+00 : f32
    %77 = vector.broadcast %cst_21 : f32 to vector<4x128xf32>
    %78 = arith.addf %77, %76 : vector<4x128xf32>
    %79 = arith.divf %77, %78 : vector<4x128xf32>
    %80 = arith.subf %73, %51 : vector<4x128xf32>
    %81 = arith.negf %80 : vector<4x128xf32>
    %82 = math.exp %81 : vector<4x128xf32>
    %cst_22 = arith.constant 1.000000e+00 : f32
    %83 = vector.broadcast %cst_22 : f32 to vector<4x128xf32>
    %84 = arith.addf %83, %82 : vector<4x128xf32>
    %85 = arith.divf %83, %84 : vector<4x128xf32>
    %cst_23 = arith.constant 2.550000e+02 : f32
    %86 = vector.broadcast %cst_23 : f32 to vector<1x128xf32>
    %87 = arith.cmpf oge, %59, %86 : vector<1x128xf32>
    %cst_24 = arith.constant 1.000000e+00 : f32
    %88 = vector.shape_cast %87 : vector<1x128xi1> to vector<1x128xi1>
    %89 = vector.broadcast %88 : vector<1x128xi1> to vector<4x128xi1>
    %90 = vector.broadcast %cst_24 : f32 to vector<4x128xf32>
    %91 = arith.select %89, %90, %79 : vector<4x128xi1>, vector<4x128xf32>
    %cst_25 = arith.constant 0.000000e+00 : f32
    %92 = vector.broadcast %cst_25 : f32 to vector<1x128xf32>
    %93 = arith.cmpf ole, %59, %92 : vector<1x128xf32>
    %cst_26 = arith.constant 0.000000e+00 : f32
    %94 = vector.shape_cast %93 : vector<1x128xi1> to vector<1x128xi1>
    %95 = vector.broadcast %94 : vector<1x128xi1> to vector<4x128xi1>
    %96 = vector.broadcast %cst_26 : f32 to vector<4x128xf32>
    %97 = arith.select %95, %96, %85 : vector<4x128xi1>, vector<4x128xf32>
    %98 = arith.subf %91, %97 : vector<4x128xf32>
    %99 = vector.broadcast %64 : vector<1x128xf32> to vector<4x128xf32>
    %100 = arith.mulf %99, %98 : vector<4x128xf32>
    %101 = arith.addf %97, %100 : vector<4x128xf32>
    %102 = vector.extract_strided_slice %5 {offsets = [0, 0], sizes = [1, 128], strides = [1, 1]} : vector<3x128xf32> to vector<1x128xf32>
    %cst_27 = arith.constant 2.560000e+02 : f32
    %103 = vector.broadcast %cst_27 : f32 to vector<1x128xf32>
    %104 = arith.mulf %102, %103 : vector<1x128xf32>
    %105 = math.floor %104 : vector<1x128xf32>
    %cst_28 = arith.constant 0.000000e+00 : f32
    %cst_29 = arith.constant 2.550000e+02 : f32
    %106 = vector.broadcast %cst_28 : f32 to vector<1x128xf32>
    %107 = arith.maximumf %106, %105 : vector<1x128xf32>
    %108 = vector.broadcast %cst_29 : f32 to vector<1x128xf32>
    %109 = arith.minimumf %108, %107 : vector<1x128xf32>
    %110 = arith.subf %104, %109 : vector<1x128xf32>
    %cst_30 = arith.constant 0.000000e+00 : f32
    %cst_31 = arith.constant 1.000000e+00 : f32
    %111 = vector.broadcast %cst_30 : f32 to vector<1x128xf32>
    %112 = arith.maximumf %111, %110 : vector<1x128xf32>
    %113 = vector.broadcast %cst_31 : f32 to vector<1x128xf32>
    %114 = arith.minimumf %113, %112 : vector<1x128xf32>
    %cst_32 = arith.constant 2.000000e+00 : f32
    %115 = vector.broadcast %cst_32 : f32 to vector<1x128xf32>
    %116 = arith.mulf %115, %109 : vector<1x128xf32>
    %cst_33 = arith.constant 2.550000e+02 : f32
    %117 = vector.broadcast %cst_33 : f32 to vector<1x128xf32>
    %118 = arith.divf %116, %117 : vector<1x128xf32>
    %cst_34 = arith.constant 1.000000e+00 : f32
    %119 = vector.broadcast %cst_34 : f32 to vector<1x128xf32>
    %120 = arith.subf %118, %119 : vector<1x128xf32>
    %121 = vector.broadcast %120 : vector<1x128xf32> to vector<4x128xf32>
    %122 = arith.subf %121, %28 : vector<4x128xf32>
    %123 = arith.mulf %122, %49 : vector<4x128xf32>
    %124 = arith.addf %123, %51 : vector<4x128xf32>
    %125 = arith.negf %124 : vector<4x128xf32>
    %126 = math.exp %125 : vector<4x128xf32>
    %cst_35 = arith.constant 1.000000e+00 : f32
    %127 = vector.broadcast %cst_35 : f32 to vector<4x128xf32>
    %128 = arith.addf %127, %126 : vector<4x128xf32>
    %129 = arith.divf %127, %128 : vector<4x128xf32>
    %130 = arith.subf %123, %51 : vector<4x128xf32>
    %131 = arith.negf %130 : vector<4x128xf32>
    %132 = math.exp %131 : vector<4x128xf32>
    %cst_36 = arith.constant 1.000000e+00 : f32
    %133 = vector.broadcast %cst_36 : f32 to vector<4x128xf32>
    %134 = arith.addf %133, %132 : vector<4x128xf32>
    %135 = arith.divf %133, %134 : vector<4x128xf32>
    %cst_37 = arith.constant 2.550000e+02 : f32
    %136 = vector.broadcast %cst_37 : f32 to vector<1x128xf32>
    %137 = arith.cmpf oge, %109, %136 : vector<1x128xf32>
    %cst_38 = arith.constant 1.000000e+00 : f32
    %138 = vector.shape_cast %137 : vector<1x128xi1> to vector<1x128xi1>
    %139 = vector.broadcast %138 : vector<1x128xi1> to vector<4x128xi1>
    %140 = vector.broadcast %cst_38 : f32 to vector<4x128xf32>
    %141 = arith.select %139, %140, %129 : vector<4x128xi1>, vector<4x128xf32>
    %cst_39 = arith.constant 0.000000e+00 : f32
    %142 = vector.broadcast %cst_39 : f32 to vector<1x128xf32>
    %143 = arith.cmpf ole, %109, %142 : vector<1x128xf32>
    %cst_40 = arith.constant 0.000000e+00 : f32
    %144 = vector.shape_cast %143 : vector<1x128xi1> to vector<1x128xi1>
    %145 = vector.broadcast %144 : vector<1x128xi1> to vector<4x128xi1>
    %146 = vector.broadcast %cst_40 : f32 to vector<4x128xf32>
    %147 = arith.select %145, %146, %135 : vector<4x128xi1>, vector<4x128xf32>
    %148 = arith.subf %141, %147 : vector<4x128xf32>
    %149 = vector.broadcast %114 : vector<1x128xf32> to vector<4x128xf32>
    %150 = arith.mulf %149, %148 : vector<4x128xf32>
    %151 = arith.addf %147, %150 : vector<4x128xf32>
    %152 = arith.mulf %17, %101 : vector<4x128xf32>
    %cst_41 = arith.constant dense<0.000000e+00> : vector<128xf32>
    %153 = vector.multi_reduction <add>, %152, %cst_41 [0] : vector<4x128xf32> to vector<128xf32>
    %154 = vector.shape_cast %153 : vector<128xf32> to vector<1x128xf32>
    %cst_42 = arith.constant 0.000000e+00 : f32
    %cst_43 = arith.constant 1.000000e+00 : f32
    %155 = vector.broadcast %cst_42 : f32 to vector<1x128xf32>
    %156 = arith.maximumf %155, %154 : vector<1x128xf32>
    %157 = vector.broadcast %cst_43 : f32 to vector<1x128xf32>
    %158 = arith.minimumf %157, %156 : vector<1x128xf32>
    %159 = arith.mulf %17, %151 : vector<4x128xf32>
    %cst_44 = arith.constant dense<0.000000e+00> : vector<128xf32>
    %160 = vector.multi_reduction <add>, %159, %cst_44 [0] : vector<4x128xf32> to vector<128xf32>
    %161 = vector.shape_cast %160 : vector<128xf32> to vector<1x128xf32>
    %cst_45 = arith.constant 0.000000e+00 : f32
    %cst_46 = arith.constant 1.000000e+00 : f32
    %162 = vector.broadcast %cst_45 : f32 to vector<1x128xf32>
    %163 = arith.maximumf %162, %161 : vector<1x128xf32>
    %164 = vector.broadcast %cst_46 : f32 to vector<1x128xf32>
    %165 = arith.minimumf %164, %163 : vector<1x128xf32>
    %166 = vector.extract_strided_slice %21 {offsets = [4, 0], sizes = [4, 128], strides = [1, 1]} : vector<12x128xf32> to vector<4x128xf32>
    %cst_47 = arith.constant 0.000000e+00 : f32
    %167 = vector.broadcast %cst_47 : f32 to vector<4x128xf32>
    %168 = arith.subf %167, %166 : vector<4x128xf32>
    %169 = math.exp %168 : vector<4x128xf32>
    %cst_48 = arith.constant 0.00392156886 : f32
    %170 = vector.broadcast %cst_48 : f32 to vector<4x128xf32>
    %171 = arith.mulf %170, %169 : vector<4x128xf32>
    %172 = vector.extract_strided_slice %4 {offsets = [1, 0], sizes = [1, 128], strides = [1, 1]} : vector<3x128xf32> to vector<1x128xf32>
    %cst_49 = arith.constant 2.560000e+02 : f32
    %173 = vector.broadcast %cst_49 : f32 to vector<1x128xf32>
    %174 = arith.mulf %172, %173 : vector<1x128xf32>
    %175 = math.floor %174 : vector<1x128xf32>
    %cst_50 = arith.constant 0.000000e+00 : f32
    %cst_51 = arith.constant 2.550000e+02 : f32
    %176 = vector.broadcast %cst_50 : f32 to vector<1x128xf32>
    %177 = arith.maximumf %176, %175 : vector<1x128xf32>
    %178 = vector.broadcast %cst_51 : f32 to vector<1x128xf32>
    %179 = arith.minimumf %178, %177 : vector<1x128xf32>
    %180 = arith.subf %174, %179 : vector<1x128xf32>
    %cst_52 = arith.constant 0.000000e+00 : f32
    %cst_53 = arith.constant 1.000000e+00 : f32
    %181 = vector.broadcast %cst_52 : f32 to vector<1x128xf32>
    %182 = arith.maximumf %181, %180 : vector<1x128xf32>
    %183 = vector.broadcast %cst_53 : f32 to vector<1x128xf32>
    %184 = arith.minimumf %183, %182 : vector<1x128xf32>
    %cst_54 = arith.constant 2.000000e+00 : f32
    %185 = vector.broadcast %cst_54 : f32 to vector<1x128xf32>
    %186 = arith.mulf %185, %179 : vector<1x128xf32>
    %cst_55 = arith.constant 2.550000e+02 : f32
    %187 = vector.broadcast %cst_55 : f32 to vector<1x128xf32>
    %188 = arith.divf %186, %187 : vector<1x128xf32>
    %cst_56 = arith.constant 1.000000e+00 : f32
    %189 = vector.broadcast %cst_56 : f32 to vector<1x128xf32>
    %190 = arith.subf %188, %189 : vector<1x128xf32>
    %191 = vector.broadcast %190 : vector<1x128xf32> to vector<4x128xf32>
    %192 = arith.subf %191, %34 : vector<4x128xf32>
    %193 = arith.mulf %192, %169 : vector<4x128xf32>
    %194 = arith.addf %193, %171 : vector<4x128xf32>
    %195 = arith.negf %194 : vector<4x128xf32>
    %196 = math.exp %195 : vector<4x128xf32>
    %cst_57 = arith.constant 1.000000e+00 : f32
    %197 = vector.broadcast %cst_57 : f32 to vector<4x128xf32>
    %198 = arith.addf %197, %196 : vector<4x128xf32>
    %199 = arith.divf %197, %198 : vector<4x128xf32>
    %200 = arith.subf %193, %171 : vector<4x128xf32>
    %201 = arith.negf %200 : vector<4x128xf32>
    %202 = math.exp %201 : vector<4x128xf32>
    %cst_58 = arith.constant 1.000000e+00 : f32
    %203 = vector.broadcast %cst_58 : f32 to vector<4x128xf32>
    %204 = arith.addf %203, %202 : vector<4x128xf32>
    %205 = arith.divf %203, %204 : vector<4x128xf32>
    %cst_59 = arith.constant 2.550000e+02 : f32
    %206 = vector.broadcast %cst_59 : f32 to vector<1x128xf32>
    %207 = arith.cmpf oge, %179, %206 : vector<1x128xf32>
    %cst_60 = arith.constant 1.000000e+00 : f32
    %208 = vector.shape_cast %207 : vector<1x128xi1> to vector<1x128xi1>
    %209 = vector.broadcast %208 : vector<1x128xi1> to vector<4x128xi1>
    %210 = vector.broadcast %cst_60 : f32 to vector<4x128xf32>
    %211 = arith.select %209, %210, %199 : vector<4x128xi1>, vector<4x128xf32>
    %cst_61 = arith.constant 0.000000e+00 : f32
    %212 = vector.broadcast %cst_61 : f32 to vector<1x128xf32>
    %213 = arith.cmpf ole, %179, %212 : vector<1x128xf32>
    %cst_62 = arith.constant 0.000000e+00 : f32
    %214 = vector.shape_cast %213 : vector<1x128xi1> to vector<1x128xi1>
    %215 = vector.broadcast %214 : vector<1x128xi1> to vector<4x128xi1>
    %216 = vector.broadcast %cst_62 : f32 to vector<4x128xf32>
    %217 = arith.select %215, %216, %205 : vector<4x128xi1>, vector<4x128xf32>
    %218 = arith.subf %211, %217 : vector<4x128xf32>
    %219 = vector.broadcast %184 : vector<1x128xf32> to vector<4x128xf32>
    %220 = arith.mulf %219, %218 : vector<4x128xf32>
    %221 = arith.addf %217, %220 : vector<4x128xf32>
    %222 = vector.extract_strided_slice %5 {offsets = [1, 0], sizes = [1, 128], strides = [1, 1]} : vector<3x128xf32> to vector<1x128xf32>
    %cst_63 = arith.constant 2.560000e+02 : f32
    %223 = vector.broadcast %cst_63 : f32 to vector<1x128xf32>
    %224 = arith.mulf %222, %223 : vector<1x128xf32>
    %225 = math.floor %224 : vector<1x128xf32>
    %cst_64 = arith.constant 0.000000e+00 : f32
    %cst_65 = arith.constant 2.550000e+02 : f32
    %226 = vector.broadcast %cst_64 : f32 to vector<1x128xf32>
    %227 = arith.maximumf %226, %225 : vector<1x128xf32>
    %228 = vector.broadcast %cst_65 : f32 to vector<1x128xf32>
    %229 = arith.minimumf %228, %227 : vector<1x128xf32>
    %230 = arith.subf %224, %229 : vector<1x128xf32>
    %cst_66 = arith.constant 0.000000e+00 : f32
    %cst_67 = arith.constant 1.000000e+00 : f32
    %231 = vector.broadcast %cst_66 : f32 to vector<1x128xf32>
    %232 = arith.maximumf %231, %230 : vector<1x128xf32>
    %233 = vector.broadcast %cst_67 : f32 to vector<1x128xf32>
    %234 = arith.minimumf %233, %232 : vector<1x128xf32>
    %cst_68 = arith.constant 2.000000e+00 : f32
    %235 = vector.broadcast %cst_68 : f32 to vector<1x128xf32>
    %236 = arith.mulf %235, %229 : vector<1x128xf32>
    %cst_69 = arith.constant 2.550000e+02 : f32
    %237 = vector.broadcast %cst_69 : f32 to vector<1x128xf32>
    %238 = arith.divf %236, %237 : vector<1x128xf32>
    %cst_70 = arith.constant 1.000000e+00 : f32
    %239 = vector.broadcast %cst_70 : f32 to vector<1x128xf32>
    %240 = arith.subf %238, %239 : vector<1x128xf32>
    %241 = vector.broadcast %240 : vector<1x128xf32> to vector<4x128xf32>
    %242 = arith.subf %241, %34 : vector<4x128xf32>
    %243 = arith.mulf %242, %169 : vector<4x128xf32>
    %244 = arith.addf %243, %171 : vector<4x128xf32>
    %245 = arith.negf %244 : vector<4x128xf32>
    %246 = math.exp %245 : vector<4x128xf32>
    %cst_71 = arith.constant 1.000000e+00 : f32
    %247 = vector.broadcast %cst_71 : f32 to vector<4x128xf32>
    %248 = arith.addf %247, %246 : vector<4x128xf32>
    %249 = arith.divf %247, %248 : vector<4x128xf32>
    %250 = arith.subf %243, %171 : vector<4x128xf32>
    %251 = arith.negf %250 : vector<4x128xf32>
    %252 = math.exp %251 : vector<4x128xf32>
    %cst_72 = arith.constant 1.000000e+00 : f32
    %253 = vector.broadcast %cst_72 : f32 to vector<4x128xf32>
    %254 = arith.addf %253, %252 : vector<4x128xf32>
    %255 = arith.divf %253, %254 : vector<4x128xf32>
    %cst_73 = arith.constant 2.550000e+02 : f32
    %256 = vector.broadcast %cst_73 : f32 to vector<1x128xf32>
    %257 = arith.cmpf oge, %229, %256 : vector<1x128xf32>
    %cst_74 = arith.constant 1.000000e+00 : f32
    %258 = vector.shape_cast %257 : vector<1x128xi1> to vector<1x128xi1>
    %259 = vector.broadcast %258 : vector<1x128xi1> to vector<4x128xi1>
    %260 = vector.broadcast %cst_74 : f32 to vector<4x128xf32>
    %261 = arith.select %259, %260, %249 : vector<4x128xi1>, vector<4x128xf32>
    %cst_75 = arith.constant 0.000000e+00 : f32
    %262 = vector.broadcast %cst_75 : f32 to vector<1x128xf32>
    %263 = arith.cmpf ole, %229, %262 : vector<1x128xf32>
    %cst_76 = arith.constant 0.000000e+00 : f32
    %264 = vector.shape_cast %263 : vector<1x128xi1> to vector<1x128xi1>
    %265 = vector.broadcast %264 : vector<1x128xi1> to vector<4x128xi1>
    %266 = vector.broadcast %cst_76 : f32 to vector<4x128xf32>
    %267 = arith.select %265, %266, %255 : vector<4x128xi1>, vector<4x128xf32>
    %268 = arith.subf %261, %267 : vector<4x128xf32>
    %269 = vector.broadcast %234 : vector<1x128xf32> to vector<4x128xf32>
    %270 = arith.mulf %269, %268 : vector<4x128xf32>
    %271 = arith.addf %267, %270 : vector<4x128xf32>
    %272 = arith.mulf %17, %221 : vector<4x128xf32>
    %cst_77 = arith.constant dense<0.000000e+00> : vector<128xf32>
    %273 = vector.multi_reduction <add>, %272, %cst_77 [0] : vector<4x128xf32> to vector<128xf32>
    %274 = vector.shape_cast %273 : vector<128xf32> to vector<1x128xf32>
    %cst_78 = arith.constant 0.000000e+00 : f32
    %cst_79 = arith.constant 1.000000e+00 : f32
    %275 = vector.broadcast %cst_78 : f32 to vector<1x128xf32>
    %276 = arith.maximumf %275, %274 : vector<1x128xf32>
    %277 = vector.broadcast %cst_79 : f32 to vector<1x128xf32>
    %278 = arith.minimumf %277, %276 : vector<1x128xf32>
    %279 = arith.mulf %17, %271 : vector<4x128xf32>
    %cst_80 = arith.constant dense<0.000000e+00> : vector<128xf32>
    %280 = vector.multi_reduction <add>, %279, %cst_80 [0] : vector<4x128xf32> to vector<128xf32>
    %281 = vector.shape_cast %280 : vector<128xf32> to vector<1x128xf32>
    %cst_81 = arith.constant 0.000000e+00 : f32
    %cst_82 = arith.constant 1.000000e+00 : f32
    %282 = vector.broadcast %cst_81 : f32 to vector<1x128xf32>
    %283 = arith.maximumf %282, %281 : vector<1x128xf32>
    %284 = vector.broadcast %cst_82 : f32 to vector<1x128xf32>
    %285 = arith.minimumf %284, %283 : vector<1x128xf32>
    %286 = vector.extract_strided_slice %21 {offsets = [8, 0], sizes = [4, 128], strides = [1, 1]} : vector<12x128xf32> to vector<4x128xf32>
    %cst_83 = arith.constant 0.000000e+00 : f32
    %287 = vector.broadcast %cst_83 : f32 to vector<4x128xf32>
    %288 = arith.subf %287, %286 : vector<4x128xf32>
    %289 = math.exp %288 : vector<4x128xf32>
    %cst_84 = arith.constant 0.00392156886 : f32
    %290 = vector.broadcast %cst_84 : f32 to vector<4x128xf32>
    %291 = arith.mulf %290, %289 : vector<4x128xf32>
    %292 = vector.extract_strided_slice %4 {offsets = [2, 0], sizes = [1, 128], strides = [1, 1]} : vector<3x128xf32> to vector<1x128xf32>
    %cst_85 = arith.constant 2.560000e+02 : f32
    %293 = vector.broadcast %cst_85 : f32 to vector<1x128xf32>
    %294 = arith.mulf %292, %293 : vector<1x128xf32>
    %295 = math.floor %294 : vector<1x128xf32>
    %cst_86 = arith.constant 0.000000e+00 : f32
    %cst_87 = arith.constant 2.550000e+02 : f32
    %296 = vector.broadcast %cst_86 : f32 to vector<1x128xf32>
    %297 = arith.maximumf %296, %295 : vector<1x128xf32>
    %298 = vector.broadcast %cst_87 : f32 to vector<1x128xf32>
    %299 = arith.minimumf %298, %297 : vector<1x128xf32>
    %300 = arith.subf %294, %299 : vector<1x128xf32>
    %cst_88 = arith.constant 0.000000e+00 : f32
    %cst_89 = arith.constant 1.000000e+00 : f32
    %301 = vector.broadcast %cst_88 : f32 to vector<1x128xf32>
    %302 = arith.maximumf %301, %300 : vector<1x128xf32>
    %303 = vector.broadcast %cst_89 : f32 to vector<1x128xf32>
    %304 = arith.minimumf %303, %302 : vector<1x128xf32>
    %cst_90 = arith.constant 2.000000e+00 : f32
    %305 = vector.broadcast %cst_90 : f32 to vector<1x128xf32>
    %306 = arith.mulf %305, %299 : vector<1x128xf32>
    %cst_91 = arith.constant 2.550000e+02 : f32
    %307 = vector.broadcast %cst_91 : f32 to vector<1x128xf32>
    %308 = arith.divf %306, %307 : vector<1x128xf32>
    %cst_92 = arith.constant 1.000000e+00 : f32
    %309 = vector.broadcast %cst_92 : f32 to vector<1x128xf32>
    %310 = arith.subf %308, %309 : vector<1x128xf32>
    %311 = vector.broadcast %310 : vector<1x128xf32> to vector<4x128xf32>
    %312 = arith.subf %311, %45 : vector<4x128xf32>
    %313 = arith.mulf %312, %289 : vector<4x128xf32>
    %314 = arith.addf %313, %291 : vector<4x128xf32>
    %315 = arith.negf %314 : vector<4x128xf32>
    %316 = math.exp %315 : vector<4x128xf32>
    %cst_93 = arith.constant 1.000000e+00 : f32
    %317 = vector.broadcast %cst_93 : f32 to vector<4x128xf32>
    %318 = arith.addf %317, %316 : vector<4x128xf32>
    %319 = arith.divf %317, %318 : vector<4x128xf32>
    %320 = arith.subf %313, %291 : vector<4x128xf32>
    %321 = arith.negf %320 : vector<4x128xf32>
    %322 = math.exp %321 : vector<4x128xf32>
    %cst_94 = arith.constant 1.000000e+00 : f32
    %323 = vector.broadcast %cst_94 : f32 to vector<4x128xf32>
    %324 = arith.addf %323, %322 : vector<4x128xf32>
    %325 = arith.divf %323, %324 : vector<4x128xf32>
    %cst_95 = arith.constant 2.550000e+02 : f32
    %326 = vector.broadcast %cst_95 : f32 to vector<1x128xf32>
    %327 = arith.cmpf oge, %299, %326 : vector<1x128xf32>
    %cst_96 = arith.constant 1.000000e+00 : f32
    %328 = vector.shape_cast %327 : vector<1x128xi1> to vector<1x128xi1>
    %329 = vector.broadcast %328 : vector<1x128xi1> to vector<4x128xi1>
    %330 = vector.broadcast %cst_96 : f32 to vector<4x128xf32>
    %331 = arith.select %329, %330, %319 : vector<4x128xi1>, vector<4x128xf32>
    %cst_97 = arith.constant 0.000000e+00 : f32
    %332 = vector.broadcast %cst_97 : f32 to vector<1x128xf32>
    %333 = arith.cmpf ole, %299, %332 : vector<1x128xf32>
    %cst_98 = arith.constant 0.000000e+00 : f32
    %334 = vector.shape_cast %333 : vector<1x128xi1> to vector<1x128xi1>
    %335 = vector.broadcast %334 : vector<1x128xi1> to vector<4x128xi1>
    %336 = vector.broadcast %cst_98 : f32 to vector<4x128xf32>
    %337 = arith.select %335, %336, %325 : vector<4x128xi1>, vector<4x128xf32>
    %338 = arith.subf %331, %337 : vector<4x128xf32>
    %339 = vector.broadcast %304 : vector<1x128xf32> to vector<4x128xf32>
    %340 = arith.mulf %339, %338 : vector<4x128xf32>
    %341 = arith.addf %337, %340 : vector<4x128xf32>
    %342 = vector.extract_strided_slice %5 {offsets = [2, 0], sizes = [1, 128], strides = [1, 1]} : vector<3x128xf32> to vector<1x128xf32>
    %cst_99 = arith.constant 2.560000e+02 : f32
    %343 = vector.broadcast %cst_99 : f32 to vector<1x128xf32>
    %344 = arith.mulf %342, %343 : vector<1x128xf32>
    %345 = math.floor %344 : vector<1x128xf32>
    %cst_100 = arith.constant 0.000000e+00 : f32
    %cst_101 = arith.constant 2.550000e+02 : f32
    %346 = vector.broadcast %cst_100 : f32 to vector<1x128xf32>
    %347 = arith.maximumf %346, %345 : vector<1x128xf32>
    %348 = vector.broadcast %cst_101 : f32 to vector<1x128xf32>
    %349 = arith.minimumf %348, %347 : vector<1x128xf32>
    %350 = arith.subf %344, %349 : vector<1x128xf32>
    %cst_102 = arith.constant 0.000000e+00 : f32
    %cst_103 = arith.constant 1.000000e+00 : f32
    %351 = vector.broadcast %cst_102 : f32 to vector<1x128xf32>
    %352 = arith.maximumf %351, %350 : vector<1x128xf32>
    %353 = vector.broadcast %cst_103 : f32 to vector<1x128xf32>
    %354 = arith.minimumf %353, %352 : vector<1x128xf32>
    %cst_104 = arith.constant 2.000000e+00 : f32
    %355 = vector.broadcast %cst_104 : f32 to vector<1x128xf32>
    %356 = arith.mulf %355, %349 : vector<1x128xf32>
    %cst_105 = arith.constant 2.550000e+02 : f32
    %357 = vector.broadcast %cst_105 : f32 to vector<1x128xf32>
    %358 = arith.divf %356, %357 : vector<1x128xf32>
    %cst_106 = arith.constant 1.000000e+00 : f32
    %359 = vector.broadcast %cst_106 : f32 to vector<1x128xf32>
    %360 = arith.subf %358, %359 : vector<1x128xf32>
    %361 = vector.broadcast %360 : vector<1x128xf32> to vector<4x128xf32>
    %362 = arith.subf %361, %45 : vector<4x128xf32>
    %363 = arith.mulf %362, %289 : vector<4x128xf32>
    %364 = arith.addf %363, %291 : vector<4x128xf32>
    %365 = arith.negf %364 : vector<4x128xf32>
    %366 = math.exp %365 : vector<4x128xf32>
    %cst_107 = arith.constant 1.000000e+00 : f32
    %367 = vector.broadcast %cst_107 : f32 to vector<4x128xf32>
    %368 = arith.addf %367, %366 : vector<4x128xf32>
    %369 = arith.divf %367, %368 : vector<4x128xf32>
    %370 = arith.subf %363, %291 : vector<4x128xf32>
    %371 = arith.negf %370 : vector<4x128xf32>
    %372 = math.exp %371 : vector<4x128xf32>
    %cst_108 = arith.constant 1.000000e+00 : f32
    %373 = vector.broadcast %cst_108 : f32 to vector<4x128xf32>
    %374 = arith.addf %373, %372 : vector<4x128xf32>
    %375 = arith.divf %373, %374 : vector<4x128xf32>
    %cst_109 = arith.constant 2.550000e+02 : f32
    %376 = vector.broadcast %cst_109 : f32 to vector<1x128xf32>
    %377 = arith.cmpf oge, %349, %376 : vector<1x128xf32>
    %cst_110 = arith.constant 1.000000e+00 : f32
    %378 = vector.shape_cast %377 : vector<1x128xi1> to vector<1x128xi1>
    %379 = vector.broadcast %378 : vector<1x128xi1> to vector<4x128xi1>
    %380 = vector.broadcast %cst_110 : f32 to vector<4x128xf32>
    %381 = arith.select %379, %380, %369 : vector<4x128xi1>, vector<4x128xf32>
    %cst_111 = arith.constant 0.000000e+00 : f32
    %382 = vector.broadcast %cst_111 : f32 to vector<1x128xf32>
    %383 = arith.cmpf ole, %349, %382 : vector<1x128xf32>
    %cst_112 = arith.constant 0.000000e+00 : f32
    %384 = vector.shape_cast %383 : vector<1x128xi1> to vector<1x128xi1>
    %385 = vector.broadcast %384 : vector<1x128xi1> to vector<4x128xi1>
    %386 = vector.broadcast %cst_112 : f32 to vector<4x128xf32>
    %387 = arith.select %385, %386, %375 : vector<4x128xi1>, vector<4x128xf32>
    %388 = arith.subf %381, %387 : vector<4x128xf32>
    %389 = vector.broadcast %354 : vector<1x128xf32> to vector<4x128xf32>
    %390 = arith.mulf %389, %388 : vector<4x128xf32>
    %391 = arith.addf %387, %390 : vector<4x128xf32>
    %392 = arith.mulf %17, %341 : vector<4x128xf32>
    %cst_113 = arith.constant dense<0.000000e+00> : vector<128xf32>
    %393 = vector.multi_reduction <add>, %392, %cst_113 [0] : vector<4x128xf32> to vector<128xf32>
    %394 = vector.shape_cast %393 : vector<128xf32> to vector<1x128xf32>
    %cst_114 = arith.constant 0.000000e+00 : f32
    %cst_115 = arith.constant 1.000000e+00 : f32
    %395 = vector.broadcast %cst_114 : f32 to vector<1x128xf32>
    %396 = arith.maximumf %395, %394 : vector<1x128xf32>
    %397 = vector.broadcast %cst_115 : f32 to vector<1x128xf32>
    %398 = arith.minimumf %397, %396 : vector<1x128xf32>
    %399 = arith.mulf %17, %391 : vector<4x128xf32>
    %cst_116 = arith.constant dense<0.000000e+00> : vector<128xf32>
    %400 = vector.multi_reduction <add>, %399, %cst_116 [0] : vector<4x128xf32> to vector<128xf32>
    %401 = vector.shape_cast %400 : vector<128xf32> to vector<1x128xf32>
    %cst_117 = arith.constant 0.000000e+00 : f32
    %cst_118 = arith.constant 1.000000e+00 : f32
    %402 = vector.broadcast %cst_117 : f32 to vector<1x128xf32>
    %403 = arith.maximumf %402, %401 : vector<1x128xf32>
    %404 = vector.broadcast %cst_118 : f32 to vector<1x128xf32>
    %405 = arith.minimumf %404, %403 : vector<1x128xf32>
    %406 = tpu.concatenate %158, %278, %398, %165, %285, %405 in 0 : vector<1x128xf32>, vector<1x128xf32>, vector<1x128xf32>, vector<1x128xf32>, vector<1x128xf32>, vector<1x128xf32> -> vector<6x128xf32>
    %c0_119 = arith.constant 0 : index
    %c0_120 = arith.constant 0 : index
    %407 = vector.load %arg4[%c0_119, %c0_120] : memref<6x128xf32, #tpu.memory_space<vmem>>, vector<6x128xf32>
    tpu.vector_store %arg4[%c0_119, %c0_120], %406 {strides = array<i32>} : memref<6x128xf32, #tpu.memory_space<vmem>>, vector<6x128xf32>,
    return
  }
  func.func @transform_0(%arg0: i32) -> (i32, i32) {
    %c0_i32 = arith.constant 0 : i32
    %c0_i32_0 = arith.constant 0 : i32
    return %c0_i32, %arg0 : i32, i32
  }
  func.func @transform_1(%arg0: i32) -> (i32, i32) {
    %c0_i32 = arith.constant 0 : i32
    %c0_i32_0 = arith.constant 0 : i32
    %c0_i32_1 = arith.constant 0 : i32
    return %c0_i32, %c0_i32_0 : i32, i32
  }
  func.func @transform_2(%arg0: i32) -> (i32, i32) {
    %c0_i32 = arith.constant 0 : i32
    %c0_i32_0 = arith.constant 0 : i32
    return %c0_i32, %arg0 : i32, i32
  }
  func.func @transform_3(%arg0: i32) -> (i32, i32) {
    %c0_i32 = arith.constant 0 : i32
    %c0_i32_0 = arith.constant 0 : i32
    return %c0_i32, %arg0 : i32, i32
  }
}

</mosaic_0001>

<llo_original>
// kernel: tpu_custom_call.1
$region0: #{tpu_custom_call.1}
  #allocation0 [shape = 'u32[]', space=smem, size = 0x4, offset = 0x4, fixed_abs, tag = 'smem constant byte address 0x4 - core index']
  #allocation1 [shape = 'u32[144,128]{1,0:T(1,128)}', space=vmem, size = 0x12000, scoped, tag = 'internal scratch']
  %s0 = inlined_call_operand.hbm [shape: f32[13,512], index: 0, kind: input, shape index: {}]
  %s1 = inlined_call_operand.vmem [shape: f32[40,13], index: 1, kind: input, shape index: {}]
  %s2 = inlined_call_operand.vmem [shape: f32[6,512], index: 2, kind: input, shape index: {}]
  %s3 = inlined_call_operand.hbm [shape: f32[6,512], index: 3, kind: output, shape index: {}]
  %s4 = sld [smem:[#allocation0]]
  $region49: #{tpu_custom_call.1} parent=0
    _
  %s6 = ssub.s32 1, %s4
  %s7 = scalar_select 0, %s6, %s4
  $region1: #{tpu_custom_call.1} parent=0
    #allocation2 [shape = 'u8[16384]{0}', space=vmem, size = 0x4000, scoped, tag = 'input window, operand 0']
    #allocation3 [shape = 's32[2]{0}', space=sflag, size = 0x8, scoped, tag = 'scoped memory for tpu_custom_call.1']
    #allocation4 [shape = 's32[2]{0}', space=sflag, size = 0x8, scoped, tag = 'scoped memory for tpu_custom_call.1']
    #allocation5 [shape = 'u8[8192]{0}', space=vmem, size = 0x2000, scoped, tag = 'output window, operand 0']
    %8 = vsyncpa [#allocation3], 0
    %s9 = scalar_lea.sflag [#allocation3], 1
    %10 = vsyncpa %s9, 0
    %11 = vsyncpa [#allocation4], 0
    %s12 = scalar_lea.sflag [#allocation4], 1
    %13 = vsyncpa %s12, 0
    loop: start=0, step=1, limit=6
    $region2: #{tpu_custom_call.1} parent=1 // loop_pre_header
      _
    $region3: #{tpu_custom_call.1} parent=1 // loop_header
      %s15 = sphi 0, %s19
      %p16 = scmp.ge.s32.totalorder %s15, 6
      %s25 = sphi 0, %s27
      %s28 = sphi 0, %s25
      %s29 = sphi 0, %s28
      %s45 = sphi 0, %s29
      %s49 = sphi 0, %s49
      %s51 = sphi 0, %s49
      %s52 = sphi 0, %s51
      %s66 = sphi 0, %s52
      %s72 = sphi 0, %s74
      %s75 = sphi 0, %s72
      %s76 = sphi 0, %s75
      %s92 = sphi 0, %s76
      %s98 = sphi 0, %s100
      %s101 = sphi 0, %s98
      %s102 = sphi 0, %s101
      %s118 = sphi 0, %s102
    $region4: #{tpu_custom_call.1} parent=1 // loop_header_branch
      %18 = sbr.rel (%p16) target = $region8
    $region5: #{tpu_custom_call.1} parent=1 // loop_body
      %s20 = ssub.s32 %s15, 1
      %s21 = ssub.s32 %s15, 2
      %s22 = sadd.s32 %s15, 1
      %s23 = ssub.s32 %s15, %s22
      %p24 = scmp.eq.s32.totalorder %s23, 0
      %s26 = sadd.s32 %s25, 1
      %s27 = scalar_select %p24, %s25, %s26
      %p30 = pneg %p24
      %p31 = scmp.eq.s32.totalorder %s15, 3
      %p32 = por %p30, %p31
      %p33 = scmp.ne.s32.totalorder %s25, %s28
      %p34 = scmp.eq.s32.totalorder %s15, 0
      %p35 = por %p33, %p34
      %p36 = scmp.ne.s32.totalorder %s25, %s28
      %p37 = scmp.eq.s32.totalorder %s20, 3
      %p38 = por %p36, %p37
      %p39 = scmp.ne.s32.totalorder %s28, %s29
      %p40 = scmp.eq.s32.totalorder %s20, 0
      %p41 = por %p39, %p40
      %p42 = scmp.ne.s32.totalorder %s28, %s29
      %p43 = scmp.eq.s32.totalorder %s21, 3
      %p44 = por %p42, %p43
      %p46 = scmp.ne.s32.totalorder %s29, %s45
      %p47 = scmp.eq.s32.totalorder %s21, 0
      %p48 = por %p46, %p47
      %s50 = sadd.s32 %s49, 1
      %p53 = scmp.eq.s32.totalorder %s15, 3
      %p54 = scmp.ne.s32.totalorder %s49, %s51
      %p55 = scmp.eq.s32.totalorder %s15, 0
      %p56 = por %p54, %p55
      %p57 = scmp.ne.s32.totalorder %s49, %s51
      %p58 = scmp.eq.s32.totalorder %s20, 3
      %p59 = por %p57, %p58
      %p60 = scmp.ne.s32.totalorder %s51, %s52
      %p61 = scmp.eq.s32.totalorder %s20, 0
      %p62 = por %p60, %p61
      %p63 = scmp.ne.s32.totalorder %s51, %s52
      %p64 = scmp.eq.s32.totalorder %s21, 3
      %p65 = por %p63, %p64
      %p67 = scmp.ne.s32.totalorder %s52, %s66
      %p68 = scmp.eq.s32.totalorder %s21, 0
      %p69 = por %p67, %p68
      %s70 = ssub.s32 %s15, %s22
      %p71 = scmp.eq.s32.totalorder %s70, 0
      %s73 = sadd.s32 %s72, 1
      %s74 = scalar_select %p71, %s72, %s73
      %p77 = pneg %p71
      %p78 = scmp.eq.s32.totalorder %s15, 3
      %p79 = por %p77, %p78
      %p80 = scmp.ne.s32.totalorder %s72, %s75
      %p81 = scmp.eq.s32.totalorder %s15, 0
      %p82 = por %p80, %p81
      %p83 = scmp.ne.s32.totalorder %s72, %s75
      %p84 = scmp.eq.s32.totalorder %s20, 3
      %p85 = por %p83, %p84
      %p86 = scmp.ne.s32.totalorder %s75, %s76
      %p87 = scmp.eq.s32.totalorder %s20, 0
      %p88 = por %p86, %p87
      %p89 = scmp.ne.s32.totalorder %s75, %s76
      %p90 = scmp.eq.s32.totalorder %s21, 3
      %p91 = por %p89, %p90
      %p93 = scmp.ne.s32.totalorder %s76, %s92
      %p94 = scmp.eq.s32.totalorder %s21, 0
      %p95 = por %p93, %p94
      %s96 = ssub.s32 %s15, %s22
      %p97 = scmp.eq.s32.totalorder %s96, 0
      %s99 = sadd.s32 %s98, 1
      %s100 = scalar_select %p97, %s98, %s99
      %p103 = pneg %p97
      %p104 = scmp.eq.s32.totalorder %s15, 3
      %p105 = por %p103, %p104
      %p106 = scmp.ne.s32.totalorder %s98, %s101
      %p107 = scmp.eq.s32.totalorder %s15, 0
      %p108 = por %p106, %p107
      %p109 = scmp.ne.s32.totalorder %s98, %s101
      %p110 = scmp.eq.s32.totalorder %s20, 3
      %p111 = por %p109, %p110
      %p112 = scmp.ne.s32.totalorder %s101, %s102
      %p113 = scmp.eq.s32.totalorder %s20, 0
      %p114 = por %p112, %p113
      %p115 = scmp.ne.s32.totalorder %s101, %s102
      %p116 = scmp.eq.s32.totalorder %s21, 3
      %p117 = por %p115, %p116
      %p119 = scmp.ne.s32.totalorder %s102, %s118
      %p120 = scmp.eq.s32.totalorder %s21, 0
      %p121 = por %p119, %p120
      %p122 = scmp.le.s32.totalorder 1, %s15
      %p123 = scmp.lt.s32.totalorder %s15, 5
      %p124 = pnand %p122, %p123
      %p125 = pneg %p124
      // Predicated region
      $region9: #{tpu_custom_call.1} parent=5 // pred_check
        _
      $region10: #{tpu_custom_call.1} parent=5 // pred_check_branch
        %127 = sbr.rel (%p124) target = $region12
      $region11: #{tpu_custom_call.1} parent=5 // pred_region
        %s128 = ssub.s32 %s15, 1
        // Predicated region
        $region13: #{tpu_custom_call.1} parent=11 // pred_check
          %p129 = pneg %p62
        $region14: #{tpu_custom_call.1} parent=11 // pred_check_branch
          %131 = sbr.rel (%p129) target = $region16
        $region15: #{tpu_custom_call.1} parent=11 // pred_region
          _
        $region16: #{tpu_custom_call.1} parent=11 // pred_fallthru
          _
      $region12: #{tpu_custom_call.1} parent=5 // pred_fallthru
        _
      %p132 = scmp.lt.s32.totalorder %s15, 4
      // Predicated region
      $region17: #{tpu_custom_call.1} parent=5 // pred_check
        %p133 = pneg %p132
      $region18: #{tpu_custom_call.1} parent=5 // pred_check_branch
        %135 = sbr.rel (%p133) target = $region20
      $region19: #{tpu_custom_call.1} parent=5 // pred_region
        // Predicated region
        $region21: #{tpu_custom_call.1} parent=19 // pred_check
          %p136 = pneg %p35
        $region22: #{tpu_custom_call.1} parent=19 // pred_check_branch
          %138 = sbr.rel (%p136) target = $region24
        $region23: #{tpu_custom_call.1} parent=19 // pred_region
          %s139 = sand.u32 %s25, 1
          %s140 = scalar_lea.sflag [#allocation3], %s139
          %s141 = sand.u32 %s25, 1
          %s142 = smul.addr %s141, 16
          %s143 = scalar_lea.vmem [#allocation2], %s142
          %s145 = ssub.s32 256, 256
          %146 = vsyncadd %s140, %s145
          %s147 = smul.addr %s15, 128
          %s148 = scalar_lea.hbm %s0, %s147
          %s149 = sshll.u32 %s143, 4
          %s150 = int_to_ptr.vmem [resolvable:$true] %s149
          %155 = dma.hbm_to_vmem [thread:$0]  %s148, 256, %s150, %s140, 512, 128, 8
        $region24: #{tpu_custom_call.1} parent=19 // pred_fallthru
          _
        // Predicated region
        $region25: #{tpu_custom_call.1} parent=19 // pred_check
          %p156 = pneg %p82
        $region26: #{tpu_custom_call.1} parent=19 // pred_check_branch
          %158 = sbr.rel (%p156) target = $region28
        $region27: #{tpu_custom_call.1} parent=19 // pred_region
          %p159 = scmp.lt.s32.totalorder %s15, 3
          %s160 = scalar_select %p159, %s15, 3
          %s161 = smul.addr %s160, 8
          %s162 = scalar_lea.vmem %s2, %s161
        $region28: #{tpu_custom_call.1} parent=19 // pred_fallthru
          _
      $region20: #{tpu_custom_call.1} parent=5 // pred_fallthru
        _
      %p163 = scmp.le.s32.totalorder 1, %s15
      %p164 = scmp.lt.s32.totalorder %s15, 5
      %p165 = pnand %p163, %p164
      %p166 = pneg %p165
      // Predicated region
      $region29: #{tpu_custom_call.1} parent=5 // pred_check
        _
      $region30: #{tpu_custom_call.1} parent=5 // pred_check_branch
        %168 = sbr.rel (%p165) target = $region32
      $region31: #{tpu_custom_call.1} parent=5 // pred_region
        %s169 = ssub.s32 %s15, 1
        %s170 = sand.u32 %s28, 1
        %s171 = scalar_lea.sflag [#allocation3], %s170
        %s172 = sand.u32 %s28, 1
        %s173 = smul.addr %s172, 16
        %s174 = scalar_lea.vmem [#allocation2], %s173
        // Predicated region
        $region33: #{tpu_custom_call.1} parent=31 // pred_check
          %p175 = pneg %p41
        $region34: #{tpu_custom_call.1} parent=31 // pred_check_branch
          %177 = sbr.rel (%p175) target = $region36
        $region35: #{tpu_custom_call.1} parent=31 // pred_region
          %178 = dma.done %s171, 256
        $region36: #{tpu_custom_call.1} parent=31 // pred_fallthru
          _
        %s179 = sand.u32 %s28, 1
        %s180 = scalar_lea.sflag [#allocation3], %s179
        %s181 = sand.u32 %s28, 1
        %s182 = smul.addr %s181, 16
        %s183 = scalar_lea.vmem [#allocation2], %s182
        %p184 = pneg %p41
        %p185 = pneg %p38
        %p186 = pneg %p62
        %p187 = pneg %p59
        %p188 = scmp.lt.s32.totalorder %s20, 3
        %s189 = scalar_select %p188, %s20, 3
        %s190 = smul.addr %s189, 8
        %s191 = scalar_lea.vmem %s2, %s190
        %p192 = pneg %p88
        %p193 = pneg %p85
        %p194 = pneg %p114
        %p195 = pneg %p111
        %s196 = sand.u32 %s101, 1
        %s197 = scalar_lea.sflag [#allocation4], %s196
        %s198 = sand.u32 %s101, 1
        %s199 = smul.addr %s198, 8
        %s200 = scalar_lea.vmem [#allocation5], %s199
        %p201 = scmp.lt.s32.totalorder %s20, 3
        %s202 = scalar_select %p201, %s20, 3
        %s203 = smul.addr %s202, 8
        %s204 = scalar_lea.vmem %s2, %s203
        %v205 = vld [vmem:[%s1] sm:$0xff]
        %v206 = vld [vmem:[%s1 + $0x8] sm:$0xff]
        %v207 = vld [vmem:[%s1 + $0x10] sm:$0xff]
        %v208 = vld [vmem:[%s1 + $0x18] sm:$0xff]
        %v209 = vld [vmem:[%s1 + $0x20] sm:$0xff]
        %v210 = vld [vmem:[%s174] sm:$0xff]
        %v211 = vld [vmem:[%s174 + $0x8] sm:$0x1f]
        %vm212 = vcmask 105472
        %v214 = vsel %vm212, %v205, 0
        %v217 = vsel %vm212, %v206, 0
        %v220 = vsel %vm212, %v207, 0
        %v223 = vsel %vm212, %v208, 0
        %v226 = vsel %vm212, %v209, 0
        %vm228 = vcmask 1044480
        %v230 = vsel %vm228, %v211, 0
        %232 = vmatprep.subr.mxu0 0.0
        %233 = vmatpush1.msra.mxu0 %v210
        %234 = vmatprep.subr.mxu0 0.0
        %235 = vmatpush1.msra.mxu0 %v230
        %236 = vmatprep.subr.mxu0 0.0
        %237 = vmatpush1.msra.mxu0 0.0
        %238 = vmatprep.subr.mxu0 0.0
        %239 = vmatpush1.msra.mxu0 0.0
        %240 = vmatprep.subr.mxu0 0.0
        %241 = vmatpush1.msra.mxu0 0.0
        %242 = vmatprep.subr.mxu0 0.0
        %243 = vmatpush1.msra.mxu0 0.0
        %244 = vmatprep.subr.mxu0 0.0
        %245 = vmatpush1.msra.mxu0 0.0
        %246 = vmatprep.subr.mxu0 0.0
        %247 = vmatpush1.msra.mxu0 0.0
        %248 = vmatprep.subr.mxu0 0.0
        %249 = vmatpush1.msra.mxu0 0.0
        %250 = vmatprep.subr.mxu0 0.0
        %251 = vmatpush1.msra.mxu0 0.0
        %252 = vmatprep.subr.mxu0 0.0
        %253 = vmatpush1.msra.mxu0 0.0
        %254 = vmatprep.subr.mxu0 0.0
        %255 = vmatpush1.msra.mxu0 0.0
        %256 = vmatprep.subr.mxu0 0.0
        %257 = vmatpush1.msra.mxu0 0.0
        %258 = vmatprep.subr.mxu0 0.0
        %259 = vmatpush1.msra.mxu0 0.0
        %260 = vmatprep.subr.mxu0 0.0
        %261 = vmatpush1.msra.mxu0 0.0
        %262 = vmatprep.subr.mxu0 0.0
        %263 = vmatpush1.msra.mxu0 0.0
        %264 = vmatprep.subr.mxu0 0.0
        %265 = vmatpush1.msra.mxu0 0.0
        %266 = vmatprep.subr.mxu0 0.0
        %267 = vmatpush1.msra.mxu0 0.0
        %268 = vmatprep.subr.mxu0 0.0
        %269 = vmatpush1.msra.mxu0 0.0
        %270 = vmatprep.subr.mxu0 0.0
        %271 = vmatpush1.msra.mxu0 0.0
        %272 = vmatprep.subr.mxu0 0.0
        %273 = vmatpush1.msra.mxu0 0.0
        %274 = vmatprep.subr.mxu0 0.0
        %275 = vmatpush1.msra.mxu0 0.0
        %276 = vmatprep.subr.mxu0 0.0
        %277 = vmatpush1.msra.mxu0 0.0
        %278 = vmatprep.subr.mxu0 0.0
        %279 = vmatpush1.msra.mxu0 0.0
        %280 = vmatprep.subr.mxu0 0.0
        %281 = vmatpush1.msra.mxu0 0.0
        %282 = vmatprep.subr.mxu0 0.0
        %283 = vmatpush1.msra.mxu0 0.0
        %284 = vmatprep.subr.mxu0 0.0
        %285 = vmatpush1.msra.mxu0 0.0
        %286 = vmatprep.subr.mxu0 0.0
        %287 = vmatpush1.msra.mxu0 0.0
        %288 = vmatprep.subr.mxu0 0.0
        %289 = vmatpush1.msra.mxu0 0.0
        %290 = vmatprep.subr.mxu0 0.0
        %291 = vmatpush1.msra.mxu0 0.0
        %292 = vmatprep.subr.mxu0 0.0
        %293 = vmatpush1.msra.mxu0 0.0
        %294 = vmatprep.subr.mxu0 0.0
        %295 = vmatpush1.msra.mxu0 0.0
        %296 = vmatprep.mubr.f32.mxu0 0.0
        %297 = vmatmul.mubr.f32.gmra.mrb[0].mxu0 %v214
        %v298 = vpop.f32.mrb[0].mxu0
        %v299 = vadd.f32 0.0, %v298
        %v300 = vpop.f32.mrb[0].mxu0
        %301 = vmatprep.mubr.f32.mxu0 0.0
        %302 = vmatmul.mubr.f32.gmra.mrb[0].mxu0 %v217
        %v303 = vpop.f32.mrb[0].mxu0
        %v304 = vadd.f32 0.0, %v303
        %v305 = vpop.f32.mrb[0].mxu0
        %306 = vmatprep.mubr.f32.mxu0 0.0
        %307 = vmatmul.mubr.f32.gmra.mrb[0].mxu0 %v220
        %v308 = vpop.f32.mrb[0].mxu0
        %v309 = vadd.f32 0.0, %v308
        %v310 = vpop.f32.mrb[0].mxu0
        %311 = vmatprep.mubr.f32.mxu0 0.0
        %312 = vmatmul.mubr.f32.gmra.mrb[0].mxu0 %v223
        %v313 = vpop.f32.mrb[0].mxu0
        %v314 = vadd.f32 0.0, %v313
        %v315 = vpop.f32.mrb[0].mxu0
        %316 = vmatprep.mubr.f32.mxu0 0.0
        %317 = vmatmul.mubr.f32.gmra.mrb[0].mxu0 %v226
        %v318 = vpop.f32.mrb[0].mxu0
        %v319 = vadd.f32 0.0, %v318
        %v320 = vpop.f32.mrb[0].mxu0
        %321 = vdwg.mxu0
        %v322 = vld [vmem:[%s204] sm:$0x3f]
        %vm323 = vcmask 1043456
        %v324 = vsel %vm323, %v299, -inf
        %v325 = vrot.slane %v324, 4
        %v326 = vmax.f32 %v324, %v325
        %v327 = vrot.slane %v326, 2
        %v328 = vmax.f32 %v326, %v327
        %v329 = vrot.slane %v328, 1
        %v330 = vmax.f32 %v328, %v329
        %v331 = vsub.f32 %v299, %v330
        %v332 = vmul.f32 %v331, 1.442695
        %v333 = vpow.pop %v332
        %v334 = vsel %vm323, %v333, 0.0
        %v335 = vrot.slane %v334, 4
        %v336 = vadd.f32 %v334, %v335
        %v337 = vrot.slane %v336, 2
        %v338 = vadd.f32 %v336, %v337
        %v339 = vrot.slane %v338, 1
        %v340 = vadd.f32 %v338, %v339
        %v341 = vrcp.pop %v340
        %v342 = vmul.f32 1.0, %v341
        %v343 = vmul.f32 %v333, %v342
        %v344 = vmax.f32 %v309, -7.0
        %v345 = vmax.f32 %v314, -7.0
        %v346 = vtanh.pop %v314
        %v347 = vtanh.pop %v319
        %v348 = vmul.f32 %v322, 2.0
        %v349 = vsub.f32 %v348, 1.0
        %v350 = vlaneseq
        %v351 = vshrl.u32 %v350, 7
        %v352 = vsub.s32 0, %v351
        %v353 = vrot.slane %v349, %v352
        %v354 = vmul.f32 %v346, %v353
        %v356 = vrot.slane %v354, 4
        %v358 = vadd.f32 %v304, %v356
        %v359 = vmul.f32 %v347, %v353
        %v361 = vrot.slane %v359, 4
        %v363 = vadd.f32 %v304, %v361
        %v364 = vlaneseq
        %v365 = vshrl.u32 %v364, 7
        %v366 = vsub.s32 1, %v365
        %v367 = vrot.slane %v349, %v366
        %v368 = vmul.f32 %v347, %v367
        %v369 = vadd.f32 %v363, %v368
        %v370 = vsub.f32 0.0, %v344
        %v371 = vmul.f32 %v370, 1.442695
        %v372 = vpow.pop %v371
        %v373 = vmul.f32 %v372, 0.003921569
        %v374 = vmul.f32 %v322, 256.0
        %v375 = vfloor.f32 %v374
        %v376 = vmax.f32 %v375, 0.0
        %v377 = vmin.f32 %v376, 255.0
        %v378 = vsub.f32 %v374, %v377
        %v379 = vmax.f32 %v378, 0.0
        %v380 = vmin.f32 %v379, 1.0
        %v381 = vmul.f32 %v377, 2.0
        %v382 = vrcp.pop 255.0
        %v383 = vmul.f32 %v381, %v382
        %v384 = vsub.f32 %v383, 1.0
        %v385 = vlaneseq
        %v386 = vshrl.u32 %v385, 7
        %v387 = vsub.s32 0, %v386
        %v388 = vrot.slane %v384, %v387
        %v389 = vsub.f32 %v388, %v299
        %v391 = vrot.slane %v372, 4
        %v393 = vmul.f32 %v389, %v391
        %v395 = vrot.slane %v373, 4
        %v397 = vadd.f32 %v393, %v395
        %v398 = vxor.u32 %v397, 2147483648
        %v399 = vmul.f32 %v398, 1.442695
        %v400 = vpow.pop %v399
        %v401 = vadd.f32 %v400, 1.0
        %v402 = vrcp.pop %v401
        %v403 = vmul.f32 1.0, %v402
        %v404 = vsub.f32 %v393, %v395
        %v405 = vxor.u32 %v404, 2147483648
        %v406 = vmul.f32 %v405, 1.442695
        %v407 = vpow.pop %v406
        %v408 = vadd.f32 %v407, 1.0
        %v409 = vrcp.pop %v408
        %v410 = vmul.f32 1.0, %v409
        %vm411 = vcmp.ge.f32.partialorder %v377, 255.0
        %v412 = vsel %vm411, 1, 0
        %v413 = vlaneseq
        %v414 = vshrl.u32 %v413, 7
        %v415 = vsub.s32 0, %v414
        %v416 = vrot.slane %v412, %v415
        %vm417 = vcmp.eq.s32.totalorder %v416, 1
        %v418 = vsel %vm417, 1.0, %v403
        %vm419 = vcmp.le.f32.partialorder %v377, 0.0
        %v420 = vsel %vm419, 1, 0
        %v421 = vlaneseq
        %v422 = vshrl.u32 %v421, 7
        %v423 = vsub.s32 0, %v422
        %v424 = vrot.slane %v420, %v423
        %vm425 = vcmp.eq.s32.totalorder %v424, 1
        %v426 = vsel %vm425, 0.0, %v410
        %v427 = vsub.f32 %v418, %v426
        %v428 = vlaneseq
        %v429 = vshrl.u32 %v428, 7
        %v430 = vsub.s32 0, %v429
        %v431 = vrot.slane %v380, %v430
        %v432 = vmul.f32 %v431, %v427
        %v433 = vadd.f32 %v426, %v432
        %v434 = vlaneseq
        %v435 = vshrl.u32 %v434, 7
        %v436 = vsub.s32 3, %v435
        %v437 = vrot.slane %v384, %v436
        %v438 = vsub.f32 %v437, %v299
        %v439 = vmul.f32 %v438, %v391
        %v440 = vadd.f32 %v439, %v395
        %v441 = vxor.u32 %v440, 2147483648
        %v442 = vmul.f32 %v441, 1.442695
        %v443 = vpow.pop %v442
        %v444 = vadd.f32 %v443, 1.0
        %v445 = vrcp.pop %v444
        %v446 = vmul.f32 1.0, %v445
        %v447 = vsub.f32 %v439, %v395
        %v448 = vxor.u32 %v447, 2147483648
        %v449 = vmul.f32 %v448, 1.442695
        %v450 = vpow.pop %v449
        %v451 = vadd.f32 %v450, 1.0
        %v452 = vrcp.pop %v451
        %v453 = vmul.f32 1.0, %v452
        %v454 = vlaneseq
        %v455 = vshrl.u32 %v454, 7
        %v456 = vsub.s32 3, %v455
        %v457 = vrot.slane %v412, %v456
        %vm458 = vcmp.eq.s32.totalorder %v457, 1
        %v459 = vsel %vm458, 1.0, %v446
        %v460 = vlaneseq
        %v461 = vshrl.u32 %v460, 7
        %v462 = vsub.s32 3, %v461
        %v463 = vrot.slane %v420, %v462
        %vm464 = vcmp.eq.s32.totalorder %v463, 1
        %v465 = vsel %vm464, 0.0, %v453
        %v466 = vsub.f32 %v459, %v465
        %v467 = vlaneseq
        %v468 = vshrl.u32 %v467, 7
        %v469 = vsub.s32 3, %v468
        %v470 = vrot.slane %v380, %v469
        %v471 = vmul.f32 %v470, %v466
        %v472 = vadd.f32 %v465, %v471
        %v474 = vrot.slane %v433, 4
        %v476 = vmul.f32 %v343, %v474
        %v477 = vsel %vm323, %v476, 0.0
        %v478 = vrot.slane %v477, 4
        %v479 = vadd.f32 %v477, %v478
        %v480 = vrot.slane %v479, 2
        %v481 = vadd.f32 %v479, %v480
        %v482 = vrot.slane %v481, 1
        %v483 = vadd.f32 %v481, %v482
        %v484 = vmax.f32 %v483, 0.0
        %v485 = vmin.f32 %v484, 1.0
        %v487 = vrot.slane %v472, 4
        %v489 = vmul.f32 %v343, %v487
        %v490 = vsel %vm323, %v489, 0.0
        %v491 = vrot.slane %v490, 4
        %v492 = vadd.f32 %v490, %v491
        %v493 = vrot.slane %v492, 2
        %v494 = vadd.f32 %v492, %v493
        %v495 = vrot.slane %v494, 1
        %v496 = vadd.f32 %v494, %v495
        %v497 = vmax.f32 %v496, 0.0
        %v498 = vmin.f32 %v497, 1.0
        %v499 = vlaneseq
        %v500 = vshrl.u32 %v499, 7
        %v501 = vsub.s32 1, %v500
        %v502 = vrot.slane %v384, %v501
        %v503 = vsub.f32 %v502, %v358
        %v504 = vmul.f32 %v503, %v391
        %v505 = vadd.f32 %v504, %v395
        %v506 = vxor.u32 %v505, 2147483648
        %v507 = vmul.f32 %v506, 1.442695
        %v508 = vpow.pop %v507
        %v509 = vadd.f32 %v508, 1.0
        %v510 = vrcp.pop %v509
        %v511 = vmul.f32 1.0, %v510
        %v512 = vsub.f32 %v504, %v395
        %v513 = vxor.u32 %v512, 2147483648
        %v514 = vmul.f32 %v513, 1.442695
        %v515 = vpow.pop %v514
        %v516 = vadd.f32 %v515, 1.0
        %v517 = vrcp.pop %v516
        %v518 = vmul.f32 1.0, %v517
        %v519 = vlaneseq
        %v520 = vshrl.u32 %v519, 7
        %v521 = vsub.s32 1, %v520
        %v522 = vrot.slane %v412, %v521
        %vm523 = vcmp.eq.s32.totalorder %v522, 1
        %v524 = vsel %vm523, 1.0, %v511
        %v525 = vlaneseq
        %v526 = vshrl.u32 %v525, 7
        %v527 = vsub.s32 1, %v526
        %v528 = vrot.slane %v420, %v527
        %vm529 = vcmp.eq.s32.totalorder %v528, 1
        %v530 = vsel %vm529, 0.0, %v518
        %v531 = vsub.f32 %v524, %v530
        %v532 = vlaneseq
        %v533 = vshrl.u32 %v532, 7
        %v534 = vsub.s32 1, %v533
        %v535 = vrot.slane %v380, %v534
        %v536 = vmul.f32 %v535, %v531
        %v537 = vadd.f32 %v530, %v536
        %v538 = vlaneseq
        %v539 = vshrl.u32 %v538, 7
        %v540 = vsub.s32 4, %v539
        %v541 = vrot.slane %v384, %v540
        %v542 = vsub.f32 %v541, %v358
        %v543 = vmul.f32 %v542, %v391
        %v544 = vadd.f32 %v543, %v395
        %v545 = vxor.u32 %v544, 2147483648
        %v546 = vmul.f32 %v545, 1.442695
        %v547 = vpow.pop %v546
        %v548 = vadd.f32 %v547, 1.0
        %v549 = vrcp.pop %v548
        %v550 = vmul.f32 1.0, %v549
        %v551 = vsub.f32 %v543, %v395
        %v552 = vxor.u32 %v551, 2147483648
        %v553 = vmul.f32 %v552, 1.442695
        %v554 = vpow.pop %v553
        %v555 = vadd.f32 %v554, 1.0
        %v556 = vrcp.pop %v555
        %v557 = vmul.f32 1.0, %v556
        %v558 = vlaneseq
        %v559 = vshrl.u32 %v558, 7
        %v560 = vsub.s32 4, %v559
        %v561 = vrot.slane %v412, %v560
        %vm562 = vcmp.eq.s32.totalorder %v561, 1
        %v563 = vsel %vm562, 1.0, %v550
        %v564 = vlaneseq
        %v565 = vshrl.u32 %v564, 7
        %v566 = vsub.s32 4, %v565
        %v567 = vrot.slane %v420, %v566
        %vm568 = vcmp.eq.s32.totalorder %v567, 1
        %v569 = vsel %vm568, 0.0, %v557
        %v570 = vsub.f32 %v563, %v569
        %v571 = vlaneseq
        %v572 = vshrl.u32 %v571, 7
        %v573 = vsub.s32 4, %v572
        %v574 = vrot.slane %v380, %v573
        %v575 = vmul.f32 %v574, %v570
        %v576 = vadd.f32 %v569, %v575
        %v577 = vmul.f32 %v343, %v537
        %v578 = vsel %vm323, %v577, 0.0
        %v579 = vrot.slane %v578, 4
        %v580 = vadd.f32 %v578, %v579
        %v581 = vrot.slane %v580, 2
        %v582 = vadd.f32 %v580, %v581
        %v583 = vrot.slane %v582, 1
        %v584 = vadd.f32 %v582, %v583
        %v585 = vmax.f32 %v584, 0.0
        %v586 = vmin.f32 %v585, 1.0
        %v587 = vmul.f32 %v343, %v576
        %v588 = vsel %vm323, %v587, 0.0
        %v589 = vrot.slane %v588, 4
        %v590 = vadd.f32 %v588, %v589
        %v591 = vrot.slane %v590, 2
        %v592 = vadd.f32 %v590, %v591
        %v593 = vrot.slane %v592, 1
        %v594 = vadd.f32 %v592, %v593
        %v595 = vmax.f32 %v594, 0.0
        %v596 = vmin.f32 %v595, 1.0
        %v597 = vsub.f32 0.0, %v345
        %v598 = vmul.f32 %v597, 1.442695
        %v599 = vpow.pop %v598
        %v600 = vmul.f32 %v599, 0.003921569
        %v601 = vlaneseq
        %v602 = vshrl.u32 %v601, 7
        %v603 = vsub.s32 2, %v602
        %v604 = vrot.slane %v384, %v603
        %v605 = vsub.f32 %v604, %v369
        %v607 = vrot.slane %v599, 4
        %v609 = vmul.f32 %v605, %v607
        %v611 = vrot.slane %v600, 4
        %v613 = vadd.f32 %v609, %v611
        %v614 = vxor.u32 %v613, 2147483648
        %v615 = vmul.f32 %v614, 1.442695
        %v616 = vpow.pop %v615
        %v617 = vadd.f32 %v616, 1.0
        %v618 = vrcp.pop %v617
        %v619 = vmul.f32 1.0, %v618
        %v620 = vsub.f32 %v609, %v611
        %v621 = vxor.u32 %v620, 2147483648
        %v622 = vmul.f32 %v621, 1.442695
        %v623 = vpow.pop %v622
        %v624 = vadd.f32 %v623, 1.0
        %v625 = vrcp.pop %v624
        %v626 = vmul.f32 1.0, %v625
        %v627 = vlaneseq
        %v628 = vshrl.u32 %v627, 7
        %v629 = vsub.s32 2, %v628
        %v630 = vrot.slane %v412, %v629
        %vm631 = vcmp.eq.s32.totalorder %v630, 1
        %v632 = vsel %vm631, 1.0, %v619
        %v633 = vlaneseq
        %v634 = vshrl.u32 %v633, 7
        %v635 = vsub.s32 2, %v634
        %v636 = vrot.slane %v420, %v635
        %vm637 = vcmp.eq.s32.totalorder %v636, 1
        %v638 = vsel %vm637, 0.0, %v626
        %v639 = vsub.f32 %v632, %v638
        %v640 = vlaneseq
        %v641 = vshrl.u32 %v640, 7
        %v642 = vsub.s32 2, %v641
        %v643 = vrot.slane %v380, %v642
        %v644 = vmul.f32 %v643, %v639
        %v645 = vadd.f32 %v638, %v644
        %v646 = vlaneseq
        %v647 = vshrl.u32 %v646, 7
        %v648 = vsub.s32 5, %v647
        %v649 = vrot.slane %v384, %v648
        %v650 = vsub.f32 %v649, %v369
        %v651 = vmul.f32 %v650, %v607
        %v652 = vadd.f32 %v651, %v611
        %v653 = vxor.u32 %v652, 2147483648
        %v654 = vmul.f32 %v653, 1.442695
        %v655 = vpow.pop %v654
        %v656 = vadd.f32 %v655, 1.0
        %v657 = vrcp.pop %v656
        %v658 = vmul.f32 1.0, %v657
        %v659 = vsub.f32 %v651, %v611
        %v660 = vxor.u32 %v659, 2147483648
        %v661 = vmul.f32 %v660, 1.442695
        %v662 = vpow.pop %v661
        %v663 = vadd.f32 %v662, 1.0
        %v664 = vrcp.pop %v663
        %v665 = vmul.f32 1.0, %v664
        %v666 = vlaneseq
        %v667 = vshrl.u32 %v666, 7
        %v668 = vsub.s32 5, %v667
        %v669 = vrot.slane %v412, %v668
        %vm670 = vcmp.eq.s32.totalorder %v669, 1
        %v671 = vsel %vm670, 1.0, %v658
        %v672 = vlaneseq
        %v673 = vshrl.u32 %v672, 7
        %v674 = vsub.s32 5, %v673
        %v675 = vrot.slane %v420, %v674
        %vm676 = vcmp.eq.s32.totalorder %v675, 1
        %v677 = vsel %vm676, 0.0, %v665
        %v678 = vsub.f32 %v671, %v677
        %v679 = vlaneseq
        %v680 = vshrl.u32 %v679, 7
        %v681 = vsub.s32 5, %v680
        %v682 = vrot.slane %v380, %v681
        %v683 = vmul.f32 %v682, %v678
        %v684 = vadd.f32 %v677, %v683
        %v686 = vrot.slane %v645, 4
        %v688 = vmul.f32 %v343, %v686
        %v689 = vsel %vm323, %v688, 0.0
        %v690 = vrot.slane %v689, 4
        %v691 = vadd.f32 %v689, %v690
        %v692 = vrot.slane %v691, 2
        %v693 = vadd.f32 %v691, %v692
        %v694 = vrot.slane %v693, 1
        %v695 = vadd.f32 %v693, %v694
        %v696 = vmax.f32 %v695, 0.0
        %v697 = vmin.f32 %v696, 1.0
        %v699 = vrot.slane %v684, 4
        %v701 = vmul.f32 %v343, %v699
        %v702 = vsel %vm323, %v701, 0.0
        %v703 = vrot.slane %v702, 4
        %v704 = vadd.f32 %v702, %v703
        %v705 = vrot.slane %v704, 2
        %v706 = vadd.f32 %v704, %v705
        %v707 = vrot.slane %v706, 1
        %v708 = vadd.f32 %v706, %v707
        %v709 = vmax.f32 %v708, 0.0
        %v710 = vmin.f32 %v709, 1.0
        %vm711 = vcmask 1040384
        %v712 = vsel %vm711, %v485, %v586
        %vm713 = vcmask 1041408
        %v714 = vsel %vm713, %v712, %v697
        %vm715 = vcmask 1042432
        %v716 = vsel %vm715, %v714, %v498
        %v717 = vsel %vm323, %v716, %v596
        %v718 = vsel %vm228, %v717, %v710
        %719 = vst [vmem:[%s200] sm:$0x3f] %v718
        %s720 = sand.u32 %s101, 1
        %s721 = scalar_lea.sflag [#allocation4], %s720
        %s722 = sand.u32 %s101, 1
        %s723 = smul.addr %s722, 8
        %s724 = scalar_lea.vmem [#allocation5], %s723
        // Predicated region
        $region37: #{tpu_custom_call.1} parent=31 // pred_check
          %p725 = pneg %p111
        $region38: #{tpu_custom_call.1} parent=31 // pred_check_branch
          %727 = sbr.rel (%p725) target = $region40
        $region39: #{tpu_custom_call.1} parent=31 // pred_region
          %s729 = ssub.s32 128, 128
          %730 = vsyncadd %s721, %s729
          %s731 = smul.addr %s20, 128
          %s732 = scalar_lea.hbm %s3, %s731
          %s734 = sshll.u32 %s724, 4
          %s735 = int_to_ptr.vmem [resolvable:$true] %s734
          %737 = dma.vmem_to_hbm [thread:$0]  %s735, 128, %s732, %s721
        $region40: #{tpu_custom_call.1} parent=31 // pred_fallthru
          _
      $region32: #{tpu_custom_call.1} parent=5 // pred_fallthru
        _
      %p738 = scmp.le.s32.totalorder 2, %s15
      // Predicated region
      $region41: #{tpu_custom_call.1} parent=5 // pred_check
        %p739 = pneg %p738
      $region42: #{tpu_custom_call.1} parent=5 // pred_check_branch
        %741 = sbr.rel (%p739) target = $region44
      $region43: #{tpu_custom_call.1} parent=5 // pred_region
        %s742 = ssub.s32 %s15, 2
        // Predicated region
        $region45: #{tpu_custom_call.1} parent=43 // pred_check
          %p743 = pneg %p117
        $region46: #{tpu_custom_call.1} parent=43 // pred_check_branch
          %745 = sbr.rel (%p743) target = $region48
        $region47: #{tpu_custom_call.1} parent=43 // pred_region
          %s746 = sand.u32 %s102, 1
          %s747 = scalar_lea.sflag [#allocation4], %s746
          %s748 = sand.u32 %s102, 1
          %s749 = smul.addr %s748, 8
          %s750 = scalar_lea.vmem [#allocation5], %s749
          %751 = dma.done %s747, 128
        $region48: #{tpu_custom_call.1} parent=43 // pred_fallthru
          _
      $region44: #{tpu_custom_call.1} parent=5 // pred_fallthru
        _
    $region6: #{tpu_custom_call.1} parent=1 // loop_footer
      %s19 = sadd.s32 1, %s15
    $region7: #{tpu_custom_call.1} parent=1 // loop_footer_branch
      %14 = sbr.rel target = $region3
    $region8: #{tpu_custom_call.1} parent=1 // loop_exit
      _
    %752 = vsyncpa [#allocation3], 1
    %s753 = scalar_lea.sflag [#allocation3], 1
    %754 = vsyncpa %s753, 1
    %755 = vsyncpa [#allocation4], 1
    %s756 = scalar_lea.sflag [#allocation4], 1
    %757 = vsyncpa %s756, 1

</llo_original>
